<compile_context>
chip_gen: v7x
topology: tpu7x:2x2x1
jax: 0.10.0
libtpu: 0.0.40
codegen_flags: <defaults>
</compile_context>

<pallas_src>
import functools

import jax
import jax.numpy as jnp
from jax.experimental import pallas as pl
from jax.experimental.pallas import tpu as pltpu

LN_EPS = 1e-5  # torch nn.LayerNorm default


def _round_up(x, m):
    return (x + m - 1) // m * m


def _adaln_kernel(ai_ref, si_ref, g2_ref, wcat_ref, b1_ref, out_ref,
                  *, dim1, dim2, dim1_pad, dim2_pad):
    # ai_ref:   (tile, dim1_pad)
    # si_ref:   (tile, dim2_pad)
    # g2_ref:   (1, dim2_pad)           layer_norm_2.weight (zero in the pad)
    # wcat_ref: (dim2_pad, 2*dim1_pad)  [w1^T | w2^T] (zero in the pads)
    # b1_ref:   (1, dim1_pad)           linear.bias (zero in the pad)
    ai = ai_ref[...].astype(jnp.float32)
    si = si_ref[...].astype(jnp.float32)

    inv_d1 = 1.0 / dim1
    inv_d2 = 1.0 / dim2

    # ---- layer_norm_1: no affine. Statistics over the TRUE dim1 lanes. ----
    # Padded input lanes are exactly zero, so each contributes exactly mu^2
    # to sum(diff^2); subtract that analytically instead of masking (saves
    # iota+cmp+select VALU slabs per tile).
    mu_a = jnp.sum(ai, axis=-1, keepdims=True) * inv_d1
    diff_a = ai - mu_a
    sq_a = jnp.sum(diff_a * diff_a, axis=-1, keepdims=True)
    if dim1_pad != dim1:
        sq_a = sq_a - (dim1_pad - dim1) * (mu_a * mu_a)
    a_norm = diff_a * jax.lax.rsqrt(sq_a * inv_d1 + LN_EPS)

    # ---- layer_norm_2: weight-only affine. Statistics over TRUE dim2. ----
    mu_s = jnp.sum(si, axis=-1, keepdims=True) * inv_d2
    diff_s = si - mu_s
    sq_s = jnp.sum(diff_s * diff_s, axis=-1, keepdims=True)
    if dim2_pad != dim2:
        sq_s = sq_s - (dim2_pad - dim2) * (mu_s * mu_s)
    g2 = g2_ref[...].astype(jnp.float32)
    # g2's padded lanes are zero -> s_norm pad lanes are exactly zero, so the
    # padding never leaks into the matmul (wcat's pad rows are zero too).
    s_norm = diff_s * jax.lax.rsqrt(sq_s * inv_d2 + LN_EPS) * g2

    # ---- single fused matmul for linear and linear_no_bias (f32 acc). -----
    # wcat is bf16 by default -> native MXU passes; f32 accumulation.
    s_mm = s_norm.astype(wcat_ref.dtype)
    z = jnp.dot(s_mm, wcat_ref[...], preferred_element_type=jnp.float32)
    b1 = b1_ref[...].astype(jnp.float32)
    z1 = z[:, :dim1_pad] + b1     # linear (with bias)  -> sigmoid gate
    z2 = z[:, dim1_pad:]          # linear_no_bias      -> additive term

    out_ref[...] = (jax.nn.sigmoid(z1) * a_norm + z2).astype(out_ref.dtype)


def prepare_adaln_params(ln2_weight, w1, b1, w2, *, mm_dtype=jnp.bfloat16):
    """One-time (per parameter set) weight packing.

    Call this ONCE and reuse the result across adaln_pallas calls (or close
    over it under jit so it constant-folds) -- do NOT rebuild it per step.

    w1, w2: torch-layout Linear weights [dim1, dim2]; b1: [dim1];
    ln2_weight: [dim2]. mm_dtype: dtype fed to the MXU (bf16 recommended).
    """
    dim1, dim2 = w1.shape
    dim1_pad = _round_up(dim1, 128)
    dim2_pad = _round_up(dim2, 128)

    # Fused, pre-transposed, padded weights: [dim2_pad, 2*dim1_pad]
    #   cols [0, dim1_pad)          = linear.weight^T
    #   cols [dim1_pad, 2*dim1_pad) = linear_no_bias.weight^T
    w1t = jnp.pad(jnp.transpose(w1), ((0, dim2_pad - dim2), (0, dim1_pad - dim1)))
    w2t = jnp.pad(jnp.transpose(w2), ((0, dim2_pad - dim2), (0, dim1_pad - dim1)))
    wcat = jnp.concatenate([w1t, w2t], axis=1).astype(mm_dtype)

    b1r = jnp.pad(b1, (0, dim1_pad - dim1)).reshape(1, dim1_pad).astype(jnp.float32)
    g2r = jnp.pad(ln2_weight, (0, dim2_pad - dim2)).reshape(1, dim2_pad).astype(jnp.float32)

    return dict(wcat=wcat, b1=b1r, g2=g2r,
                dim1=dim1, dim2=dim2, dim1_pad=dim1_pad, dim2_pad=dim2_pad)


def adaln_pallas(ai, si, params, *, row_tile=512):
    """ai: [B, S, dim1], si: [B, S, dim2]; params from prepare_adaln_params."""
    B, S, dim1 = ai.shape
    dim2 = si.shape[-1]
    assert params["dim1"] == dim1 and params["dim2"] == dim2
    dim1_pad, dim2_pad = params["dim1_pad"], params["dim2_pad"]
    N = B * S

    in_dtype = ai.dtype
    mm_dtype = params["wcat"].dtype
    in_item = jnp.dtype(in_dtype).itemsize
    mm_item = jnp.dtype(mm_dtype).itemsize

    # Row-major collapse of (B, S) is free; rows are NOT padded -- the last
    # (ragged) grid step reads garbage rows that only affect their own
    # discarded output rows (all kernel ops are strictly row-wise).
    ai2 = ai.reshape(N, dim1)
    si2 = si.reshape(N, dim2)
    # Feature pad only when dim % 128 != 0 (keeps loads/stores lane-dense).
    if dim1_pad != dim1:
        ai2 = jnp.pad(ai2, ((0, 0), (0, dim1_pad - dim1)))
    if dim2_pad != dim2:
        si2 = jnp.pad(si2, ((0, 0), (0, dim2_pad - dim2)))

    # ---------------- VMEM budget & tile sizing ----------------
    try:
        phys_vmem = pltpu.get_tpu_info().vmem_capacity_bytes
    except Exception:
        phys_vmem = 64 << 20          # conservative fallback (v7x per-TC)
    vmem_cap = int(phys_vmem * 0.85)  # leave headroom for compiler scratch

    wcat_bytes = dim2_pad * 2 * dim1_pad * mm_item
    small_const_bytes = 4 * (dim1_pad + dim2_pad)
    # Constant blocks have a constant index_map, so the second pipeline
    # buffer is never used; single-buffer them when they are big enough to
    # matter (v7x VMEM). Small-constant cases keep the default path.
    single_buffer_consts = wcat_bytes >= (1 << 20)
    const_bufs = 1 if single_buffer_consts else 2
    const_vmem = const_bufs * (wcat_bytes + small_const_bytes)

    def _vmem_needed(tile):
        # Double-buffered row tiles: ai, si inputs + output.
        pipe = 2 * tile * (2 * dim1_pad + dim2_pad) * in_item
        # In-kernel f32 temporaries (upcasts, diff/norm slabs) + z slab.
        temps = tile * 4 * (4 * dim1_pad + 3 * dim2_pad) + tile * 4 * (2 * dim1_pad)
        return const_vmem + pipe + temps

    # Keep >= 2 grid steps whenever N allows (v7x has 2 TensorCores to shard
    # the "parallel" row axis across), and shrink the tile until it fits VMEM.
    two_step_cap = _round_up(max(pl.cdiv(N, 2), 8), 8)
    row_tile = max(8, min(_round_up(row_tile, 8), two_step_cap))
    while row_tile > 8 and _vmem_needed(row_tile) > vmem_cap:
        row_tile = max(8, _round_up(row_tile // 2, 8))

    grid = (pl.cdiv(N, row_tile),)
    vmem_limit = int(1.25 * _vmem_needed(row_tile)) + (2 << 20)
    vmem_limit = min(max(vmem_limit, 16 << 20), vmem_cap)

    cost = pl.CostEstimate(
        flops=2 * N * dim2_pad * 2 * dim1_pad + 12 * N * (dim1_pad + dim2_pad),
        transcendentals=N * (dim1_pad + 2),
        bytes_accessed=(N * (2 * dim1_pad + dim2_pad) * in_item
                        + wcat_bytes + small_const_bytes),
    )

    def _const_spec(shape):
        if single_buffer_consts:
            return pl.BlockSpec(shape, lambda i: (0, 0),
                                pipeline_mode=pl.Buffered(1))
        return pl.BlockSpec(shape, lambda i: (0, 0))

    kernel = functools.partial(
        _adaln_kernel, dim1=dim1, dim2=dim2, dim1_pad=dim1_pad, dim2_pad=dim2_pad)

    out = pl.pallas_call(
        kernel,
        out_shape=jax.ShapeDtypeStruct((N, dim1_pad), in_dtype),
        grid_spec=pltpu.PrefetchScalarGridSpec(
            num_scalar_prefetch=0,
            grid=grid,
            in_specs=[
                pl.BlockSpec((row_tile, dim1_pad), lambda i: (i, 0)),      # ai rows
                pl.BlockSpec((row_tile, dim2_pad), lambda i: (i, 0)),      # si rows
                _const_spec((1, dim2_pad)),                                # ln2 weight
                _const_spec((dim2_pad, 2 * dim1_pad)),                     # [w1^T|w2^T]
                _const_spec((1, dim1_pad)),                                # b1
            ],
            out_specs=pl.BlockSpec((row_tile, dim1_pad), lambda i: (i, 0)),
        ),
        compiler_params=pltpu.CompilerParams(
            dimension_semantics=("parallel",),
            vmem_limit_bytes=vmem_limit),
        cost_estimate=cost,
    )(ai2, si2, params["g2"], params["wcat"], params["b1"])

    if dim1_pad != dim1:
        out = out[:, :dim1]
    return out.reshape(B, S, dim1)


def adaln_ref(ai, si, ln2_weight, w1, b1, w2, mm_dtype=None):
    """Pure-JAX reference matching the PyTorch forward.

    If mm_dtype is given, the matmul operands are cast to it (f32 accumulate)
    to mirror the kernel's MXU dtype policy."""
    def ln(x, eps=LN_EPS):
        mu = jnp.mean(x, axis=-1, keepdims=True)
        var = jnp.mean(jnp.square(x - mu), axis=-1, keepdims=True)
        return (x - mu) * jax.lax.rsqrt(var + eps)

    a = ln(ai)
    s = ln(si) * ln2_weight
    if mm_dtype is not None:
        s_mm, w1m, w2m = s.astype(mm_dtype), w1.astype(mm_dtype), w2.astype(mm_dtype)
    else:
        s_mm, w1m, w2m = s, w1, w2
    z1 = jnp.dot(s_mm, w1m.T, preferred_element_type=jnp.float32) + b1
    z2 = jnp.dot(s_mm, w2m.T, preferred_element_type=jnp.float32)
    return jax.nn.sigmoid(z1) * a + z2


def _run_case(key, B, S, dim1, dim2, mm_dtype, row_tile, tol):
    k_ai, k_si, k_w1, k_b1, k_w2 = jax.random.split(key, 5)
    ai = jax.random.normal(k_ai, (B, S, dim1), dtype=jnp.float32)
    si = jax.random.normal(k_si, (B, S, dim2), dtype=jnp.float32)

    bound = 1.0 / float(jnp.sqrt(dim2))
    w1 = jax.random.uniform(k_w1, (dim1, dim2), minval=-bound, maxval=bound)
    b1 = jax.random.uniform(k_b1, (dim1,), minval=-bound, maxval=bound)
    w2 = jax.random.uniform(k_w2, (dim1, dim2), minval=-bound, maxval=bound)
    ln2_w = jnp.ones((dim2,), dtype=jnp.float32)   # nn.LayerNorm weight init

    params = prepare_adaln_params(ln2_w, w1, b1, w2, mm_dtype=mm_dtype)
    out = adaln_pallas(ai, si, params, row_tile=row_tile)
    out = jax.block_until_ready(out)

    ref = adaln_ref(ai, si, ln2_w, w1, b1, w2,
                    mm_dtype=None if mm_dtype == jnp.float32 else mm_dtype)
    assert out.shape == (B, S, dim1)
    err = float(jnp.max(jnp.abs(out - ref)))
    assert jnp.allclose(out, ref, atol=tol, rtol=tol), f"max abs err = {err}"


if __name__ == "__main__":
    key = jax.random.PRNGKey(0)
    k1, k2 = jax.random.split(key)

    # Case A: tiny, non-128-aligned dims (exercises feature padding + the
    # analytic variance correction); f32 MXU path; tight tolerance.
    _run_case(k1, B=2, S=8, dim1=32, dim2=64,
              mm_dtype=jnp.float32, row_tile=64, tol=5e-5)

    # Case B: 128-aligned dims with a ragged row count (N=111 -> 56+55 row
    # tiles, no input pad / no output slice); default bf16 MXU path validated
    # against a bf16-aware reference.
    _run_case(k2, B=3, S=37, dim1=128, dim2=256,
              mm_dtype=jnp.bfloat16, row_tile=512, tol=2e-3)

    print("KERNEL_OK")
</pallas_src>

<mosaic_0001>
module attributes {stable_mosaic.version = 11 : i64} {
  func.func @_adaln_kernel(%arg0: i32, %arg1: memref<8x128xf32, #tpu.memory_space<vmem>>, %arg2: memref<8x128xf32, #tpu.memory_space<vmem>>, %arg3: memref<1x128xf32, #tpu.memory_space<vmem>>, %arg4: memref<128x256xf32, #tpu.memory_space<vmem>>, %arg5: memref<1x128xf32, #tpu.memory_space<vmem>>, %arg6: memref<8x128xf32, #tpu.memory_space<vmem>>) attributes {dimension_semantics = [#tpu.dimension_semantics<parallel>], iteration_bounds = array<i64: 2>, scalar_prefetch = 0 : i64, scratch_operands = 0 : i64, tpu.core_type = #tpu.core_type<tc>, window_params = [{transform_indices = @transform_0, window_bounds = array<i64: 8, 128>}, {transform_indices = @transform_1, window_bounds = array<i64: 8, 128>}, {pipeline_mode = #tpu.pipeline_mode<synchronous>, transform_indices = @transform_2, window_bounds = array<i64: 1, 128>}, {pipeline_mode = #tpu.pipeline_mode<synchronous>, transform_indices = @transform_3, window_bounds = array<i64: 128, 256>}, {pipeline_mode = #tpu.pipeline_mode<synchronous>, transform_indices = @transform_4, window_bounds = array<i64: 1, 128>}, {transform_indices = @transform_5, window_bounds = array<i64: 8, 128>}]} {
    %c0 = arith.constant 0 : index
    %c0_0 = arith.constant 0 : index
    %0 = vector.load %arg1[%c0, %c0_0] : memref<8x128xf32, #tpu.memory_space<vmem>>, vector<8x128xf32>
    %c0_1 = arith.constant 0 : index
    %c0_2 = arith.constant 0 : index
    %1 = vector.load %arg2[%c0_1, %c0_2] : memref<8x128xf32, #tpu.memory_space<vmem>>, vector<8x128xf32>
    %cst = arith.constant dense<0.000000e+00> : vector<8xf32>
    %2 = vector.multi_reduction <add>, %0, %cst [1] : vector<8x128xf32> to vector<8xf32>
    %3 = vector.shape_cast %2 : vector<8xf32> to vector<8x1xf32>
    %cst_3 = arith.constant 3.125000e-02 : f32
    %4 = vector.broadcast %cst_3 : f32 to vector<8x1xf32>
    %5 = arith.mulf %3, %4 : vector<8x1xf32>
    %6 = vector.broadcast %5 : vector<8x1xf32> to vector<8x128xf32>
    %7 = arith.subf %0, %6 : vector<8x128xf32>
    %8 = arith.mulf %7, %7 : vector<8x128xf32>
    %cst_4 = arith.constant dense<0.000000e+00> : vector<8xf32>
    %9 = vector.multi_reduction <add>, %8, %cst_4 [1] : vector<8x128xf32> to vector<8xf32>
    %10 = vector.shape_cast %9 : vector<8xf32> to vector<8x1xf32>
    %11 = arith.mulf %5, %5 : vector<8x1xf32>
    %cst_5 = arith.constant 9.600000e+01 : f32
    %12 = vector.broadcast %cst_5 : f32 to vector<8x1xf32>
    %13 = arith.mulf %12, %11 : vector<8x1xf32>
    %14 = arith.subf %10, %13 : vector<8x1xf32>
    %cst_6 = arith.constant 3.125000e-02 : f32
    %15 = vector.broadcast %cst_6 : f32 to vector<8x1xf32>
    %16 = arith.mulf %14, %15 : vector<8x1xf32>
    %cst_7 = arith.constant 9.99999974E-6 : f32
    %17 = vector.broadcast %cst_7 : f32 to vector<8x1xf32>
    %18 = arith.addf %16, %17 : vector<8x1xf32>
    %19 = math.rsqrt %18 : vector<8x1xf32>
    %20 = vector.broadcast %19 : vector<8x1xf32> to vector<8x128xf32>
    %21 = arith.mulf %7, %20 : vector<8x128xf32>
    %cst_8 = arith.constant dense<0.000000e+00> : vector<8xf32>
    %22 = vector.multi_reduction <add>, %1, %cst_8 [1] : vector<8x128xf32> to vector<8xf32>
    %23 = vector.shape_cast %22 : vector<8xf32> to vector<8x1xf32>
    %cst_9 = arith.constant 1.562500e-02 : f32
    %24 = vector.broadcast %cst_9 : f32 to vector<8x1xf32>
    %25 = arith.mulf %23, %24 : vector<8x1xf32>
    %26 = vector.broadcast %25 : vector<8x1xf32> to vector<8x128xf32>
    %27 = arith.subf %1, %26 : vector<8x128xf32>
    %28 = arith.mulf %27, %27 : vector<8x128xf32>
    %cst_10 = arith.constant dense<0.000000e+00> : vector<8xf32>
    %29 = vector.multi_reduction <add>, %28, %cst_10 [1] : vector<8x128xf32> to vector<8xf32>
    %30 = vector.shape_cast %29 : vector<8xf32> to vector<8x1xf32>
    %31 = arith.mulf %25, %25 : vector<8x1xf32>
    %cst_11 = arith.constant 6.400000e+01 : f32
    %32 = vector.broadcast %cst_11 : f32 to vector<8x1xf32>
    %33 = arith.mulf %32, %31 : vector<8x1xf32>
    %34 = arith.subf %30, %33 : vector<8x1xf32>
    %c0_12 = arith.constant 0 : index
    %c0_13 = arith.constant 0 : index
    %35 = vector.load %arg3[%c0_12, %c0_13] : memref<1x128xf32, #tpu.memory_space<vmem>>, vector<1x128xf32>
    %cst_14 = arith.constant 1.562500e-02 : f32
    %36 = vector.broadcast %cst_14 : f32 to vector<8x1xf32>
    %37 = arith.mulf %34, %36 : vector<8x1xf32>
    %cst_15 = arith.constant 9.99999974E-6 : f32
    %38 = vector.broadcast %cst_15 : f32 to vector<8x1xf32>
    %39 = arith.addf %37, %38 : vector<8x1xf32>
    %40 = math.rsqrt %39 : vector<8x1xf32>
    %41 = vector.broadcast %40 : vector<8x1xf32> to vector<8x128xf32>
    %42 = arith.mulf %27, %41 : vector<8x128xf32>
    %43 = vector.broadcast %35 : vector<1x128xf32> to vector<8x128xf32>
    %44 = arith.mulf %42, %43 : vector<8x128xf32>
    %c0_16 = arith.constant 0 : index
    %c0_17 = arith.constant 0 : index
    %45 = vector.load %arg4[%c0_16, %c0_17] : memref<128x256xf32, #tpu.memory_space<vmem>>, vector<128x256xf32>
    %cst_18 = arith.constant dense<0.000000e+00> : vector<8x256xf32>
    %46 = tpu.matmul %44, %45, %cst_18 {dimension_numbers = #tpu.dot_dimension_numbers<[1], [0], [0], [1], [0, 0, 1, 1], [], []>} : vector<8x128xf32>, vector<128x256xf32>, vector<8x256xf32> -> vector<8x256xf32>
    %c0_19 = arith.constant 0 : index
    %c0_20 = arith.constant 0 : index
    %47 = vector.load %arg5[%c0_19, %c0_20] : memref<1x128xf32, #tpu.memory_space<vmem>>, vector<1x128xf32>
    %48 = vector.extract_strided_slice %46 {offsets = [0, 0], sizes = [8, 128], strides = [1, 1]} : vector<8x256xf32> to vector<8x128xf32>
    %49 = vector.broadcast %47 : vector<1x128xf32> to vector<8x128xf32>
    %50 = arith.addf %48, %49 : vector<8x128xf32>
    %51 = vector.extract_strided_slice %46 {offsets = [0, 128], sizes = [8, 128], strides = [1, 1]} : vector<8x256xf32> to vector<8x128xf32>
    %52 = arith.negf %50 : vector<8x128xf32>
    %53 = math.exp %52 : vector<8x128xf32>
    %cst_21 = arith.constant 1.000000e+00 : f32
    %54 = vector.broadcast %cst_21 : f32 to vector<8x128xf32>
    %55 = arith.addf %54, %53 : vector<8x128xf32>
    %56 = arith.divf %54, %55 : vector<8x128xf32>
    %57 = arith.mulf %56, %21 : vector<8x128xf32>
    %58 = arith.addf %57, %51 : vector<8x128xf32>
    %c0_22 = arith.constant 0 : index
    %c0_23 = arith.constant 0 : index
    %59 = vector.load %arg6[%c0_22, %c0_23] : memref<8x128xf32, #tpu.memory_space<vmem>>, vector<8x128xf32>
    tpu.vector_store %arg6[%c0_22, %c0_23], %58 {strides = array<i32>} : memref<8x128xf32, #tpu.memory_space<vmem>>, vector<8x128xf32>,
    return
  }
  func.func @transform_0(%arg0: i32) -> (i32, i32) {
    %c0_i32 = arith.constant 0 : i32
    %c0_i32_0 = arith.constant 0 : i32
    return %arg0, %c0_i32 : i32, i32
  }
  func.func @transform_1(%arg0: i32) -> (i32, i32) {
    %c0_i32 = arith.constant 0 : i32
    %c0_i32_0 = arith.constant 0 : i32
    return %arg0, %c0_i32 : i32, i32
  }
  func.func @transform_2(%arg0: i32) -> (i32, i32) {
    %c0_i32 = arith.constant 0 : i32
    %c0_i32_0 = arith.constant 0 : i32
    %c0_i32_1 = arith.constant 0 : i32
    return %c0_i32, %c0_i32_0 : i32, i32
  }
  func.func @transform_3(%arg0: i32) -> (i32, i32) {
    %c0_i32 = arith.constant 0 : i32
    %c0_i32_0 = arith.constant 0 : i32
    %c0_i32_1 = arith.constant 0 : i32
    return %c0_i32, %c0_i32_0 : i32, i32
  }
  func.func @transform_4(%arg0: i32) -> (i32, i32) {
    %c0_i32 = arith.constant 0 : i32
    %c0_i32_0 = arith.constant 0 : i32
    %c0_i32_1 = arith.constant 0 : i32
    return %c0_i32, %c0_i32_0 : i32, i32
  }
  func.func @transform_5(%arg0: i32) -> (i32, i32) {
    %c0_i32 = arith.constant 0 : i32
    %c0_i32_0 = arith.constant 0 : i32
    return %arg0, %c0_i32 : i32, i32
  }
}

</mosaic_0001>

<llo_original>
// kernel: tpu_custom_call.1
$region0: #{tpu_custom_call.1}
  #allocation0 [shape = 'u32[]', space=smem, size = 0x4, offset = 0x4, fixed_abs, tag = 'smem constant byte address 0x4 - core index']
  #allocation1 [shape = 'u32[144,128]{1,0:T(1,128)}', space=vmem, size = 0x12000, scoped, tag = 'internal scratch']
  %s0 = inlined_call_operand.hbm [shape: f32[16,128], index: 0, kind: input, shape index: {}]
  %s1 = inlined_call_operand.hbm [shape: f32[16,128], index: 1, kind: input, shape index: {}]
  %s2 = inlined_call_operand.vmem [shape: f32[1,128], index: 2, kind: input, shape index: {}]
  %s3 = inlined_call_operand.hbm [shape: f32[128,256], index: 3, kind: input, shape index: {}]
  %s4 = inlined_call_operand.vmem [shape: f32[1,128], index: 4, kind: input, shape index: {}]
  %s5 = inlined_call_operand.hbm [shape: f32[16,128], index: 5, kind: output, shape index: {}]
  %s6 = sld [smem:[#allocation0]]
  $region65: #{tpu_custom_call.1} parent=0
    _
  %s8 = ssub.s32 1, %s6
  %s9 = scalar_select 0, %s8, %s6
  $region1: #{tpu_custom_call.1} parent=0
    #allocation2 [shape = 'u8[8192]{0}', space=vmem, size = 0x2000, scoped, tag = 'input window, operand 0']
    #allocation3 [shape = 's32[2]{0}', space=sflag, size = 0x8, scoped, tag = 'scoped memory for tpu_custom_call.1']
    #allocation4 [shape = 's32[2]{0}', space=sflag, size = 0x8, scoped, tag = 'scoped memory for tpu_custom_call.1']
    #allocation5 [shape = 'u8[8192]{0}', space=vmem, size = 0x2000, scoped, tag = 'input window, operand 1']
    #allocation6 [shape = 's32[2]{0}', space=sflag, size = 0x8, scoped, tag = 'scoped memory for tpu_custom_call.1']
    #allocation7 [shape = 'u8[131072]{0}', space=vmem, size = 0x20000, scoped, tag = 'input window, operand 3, single buffered']
    #allocation8 [shape = 'u8[8192]{0}', space=vmem, size = 0x2000, scoped, tag = 'output window, operand 0']
    %10 = vsyncpa [#allocation3], 0
    %s11 = scalar_lea.sflag [#allocation3], 1
    %12 = vsyncpa %s11, 0
    %13 = vsyncpa [#allocation6], 0
    %s14 = scalar_lea.sflag [#allocation6], 1
    %15 = vsyncpa %s14, 0
    %16 = vsyncpa [#allocation4], 0
    %s17 = scalar_lea.sflag [#allocation4], 1
    %18 = vsyncpa %s17, 0
    loop: start=0, step=1, limit=4
    $region2: #{tpu_custom_call.1} parent=1 // loop_pre_header
      _
    $region3: #{tpu_custom_call.1} parent=1 // loop_header
      %s20 = sphi 0, %s24
      %p21 = scmp.ge.s32.totalorder %s20, 4
      %s30 = sphi 0, %s32
      %s33 = sphi 0, %s30
      %s34 = sphi 0, %s33
      %s50 = sphi 0, %s34
      %s56 = sphi 0, %s58
      %s59 = sphi 0, %s56
      %s60 = sphi 0, %s59
      %s76 = sphi 0, %s60
      %s80 = sphi 0, %s80
      %s82 = sphi 0, %s80
      %s83 = sphi 0, %s82
      %s97 = sphi 0, %s83
      %s101 = sphi 0, %s101
      %s103 = sphi 0, %s101
      %s104 = sphi 0, %s103
      %s118 = sphi 0, %s104
      %s122 = sphi 0, %s122
      %s124 = sphi 0, %s122
      %s125 = sphi 0, %s124
      %s139 = sphi 0, %s125
      %s145 = sphi 0, %s147
      %s148 = sphi 0, %s145
      %s149 = sphi 0, %s148
      %s165 = sphi 0, %s149
    $region4: #{tpu_custom_call.1} parent=1 // loop_header_branch
      %23 = sbr.rel (%p21) target = $region8
    $region5: #{tpu_custom_call.1} parent=1 // loop_body
      %s25 = ssub.s32 %s20, 1
      %s26 = ssub.s32 %s20, 2
      %s27 = sadd.s32 %s20, 1
      %s28 = ssub.s32 %s20, %s27
      %p29 = scmp.eq.s32.totalorder %s28, 0
      %s31 = sadd.s32 %s30, 1
      %s32 = scalar_select %p29, %s30, %s31
      %p35 = pneg %p29
      %p36 = scmp.eq.s32.totalorder %s20, 1
      %p37 = por %p35, %p36
      %p38 = scmp.ne.s32.totalorder %s30, %s33
      %p39 = scmp.eq.s32.totalorder %s20, 0
      %p40 = por %p38, %p39
      %p41 = scmp.ne.s32.totalorder %s30, %s33
      %p42 = scmp.eq.s32.totalorder %s25, 1
      %p43 = por %p41, %p42
      %p44 = scmp.ne.s32.totalorder %s33, %s34
      %p45 = scmp.eq.s32.totalorder %s25, 0
      %p46 = por %p44, %p45
      %p47 = scmp.ne.s32.totalorder %s33, %s34
      %p48 = scmp.eq.s32.totalorder %s26, 1
      %p49 = por %p47, %p48
      %p51 = scmp.ne.s32.totalorder %s34, %s50
      %p52 = scmp.eq.s32.totalorder %s26, 0
      %p53 = por %p51, %p52
      %s54 = ssub.s32 %s20, %s27
      %p55 = scmp.eq.s32.totalorder %s54, 0
      %s57 = sadd.s32 %s56, 1
      %s58 = scalar_select %p55, %s56, %s57
      %p61 = pneg %p55
      %p62 = scmp.eq.s32.totalorder %s20, 1
      %p63 = por %p61, %p62
      %p64 = scmp.ne.s32.totalorder %s56, %s59
      %p65 = scmp.eq.s32.totalorder %s20, 0
      %p66 = por %p64, %p65
      %p67 = scmp.ne.s32.totalorder %s56, %s59
      %p68 = scmp.eq.s32.totalorder %s25, 1
      %p69 = por %p67, %p68
      %p70 = scmp.ne.s32.totalorder %s59, %s60
      %p71 = scmp.eq.s32.totalorder %s25, 0
      %p72 = por %p70, %p71
      %p73 = scmp.ne.s32.totalorder %s59, %s60
      %p74 = scmp.eq.s32.totalorder %s26, 1
      %p75 = por %p73, %p74
      %p77 = scmp.ne.s32.totalorder %s60, %s76
      %p78 = scmp.eq.s32.totalorder %s26, 0
      %p79 = por %p77, %p78
      %s81 = sadd.s32 %s80, 1
      %p84 = scmp.eq.s32.totalorder %s20, 1
      %p85 = scmp.ne.s32.totalorder %s80, %s82
      %p86 = scmp.eq.s32.totalorder %s20, 0
      %p87 = por %p85, %p86
      %p88 = scmp.ne.s32.totalorder %s80, %s82
      %p89 = scmp.eq.s32.totalorder %s25, 1
      %p90 = por %p88, %p89
      %p91 = scmp.ne.s32.totalorder %s82, %s83
      %p92 = scmp.eq.s32.totalorder %s25, 0
      %p93 = por %p91, %p92
      %p94 = scmp.ne.s32.totalorder %s82, %s83
      %p95 = scmp.eq.s32.totalorder %s26, 1
      %p96 = por %p94, %p95
      %p98 = scmp.ne.s32.totalorder %s83, %s97
      %p99 = scmp.eq.s32.totalorder %s26, 0
      %p100 = por %p98, %p99
      %s102 = sadd.s32 %s101, 1
      %p105 = scmp.eq.s32.totalorder %s20, 1
      %p106 = scmp.ne.s32.totalorder %s101, %s103
      %p107 = scmp.eq.s32.totalorder %s20, 0
      %p108 = por %p106, %p107
      %p109 = scmp.ne.s32.totalorder %s101, %s103
      %p110 = scmp.eq.s32.totalorder %s25, 1
      %p111 = por %p109, %p110
      %p112 = scmp.ne.s32.totalorder %s103, %s104
      %p113 = scmp.eq.s32.totalorder %s25, 0
      %p114 = por %p112, %p113
      %p115 = scmp.ne.s32.totalorder %s103, %s104
      %p116 = scmp.eq.s32.totalorder %s26, 1
      %p117 = por %p115, %p116
      %p119 = scmp.ne.s32.totalorder %s104, %s118
      %p120 = scmp.eq.s32.totalorder %s26, 0
      %p121 = por %p119, %p120
      %s123 = sadd.s32 %s122, 1
      %p126 = scmp.eq.s32.totalorder %s20, 1
      %p127 = scmp.ne.s32.totalorder %s122, %s124
      %p128 = scmp.eq.s32.totalorder %s20, 0
      %p129 = por %p127, %p128
      %p130 = scmp.ne.s32.totalorder %s122, %s124
      %p131 = scmp.eq.s32.totalorder %s25, 1
      %p132 = por %p130, %p131
      %p133 = scmp.ne.s32.totalorder %s124, %s125
      %p134 = scmp.eq.s32.totalorder %s25, 0
      %p135 = por %p133, %p134
      %p136 = scmp.ne.s32.totalorder %s124, %s125
      %p137 = scmp.eq.s32.totalorder %s26, 1
      %p138 = por %p136, %p137
      %p140 = scmp.ne.s32.totalorder %s125, %s139
      %p141 = scmp.eq.s32.totalorder %s26, 0
      %p142 = por %p140, %p141
      %s143 = ssub.s32 %s20, %s27
      %p144 = scmp.eq.s32.totalorder %s143, 0
      %s146 = sadd.s32 %s145, 1
      %s147 = scalar_select %p144, %s145, %s146
      %p150 = pneg %p144
      %p151 = scmp.eq.s32.totalorder %s20, 1
      %p152 = por %p150, %p151
      %p153 = scmp.ne.s32.totalorder %s145, %s148
      %p154 = scmp.eq.s32.totalorder %s20, 0
      %p155 = por %p153, %p154
      %p156 = scmp.ne.s32.totalorder %s145, %s148
      %p157 = scmp.eq.s32.totalorder %s25, 1
      %p158 = por %p156, %p157
      %p159 = scmp.ne.s32.totalorder %s148, %s149
      %p160 = scmp.eq.s32.totalorder %s25, 0
      %p161 = por %p159, %p160
      %p162 = scmp.ne.s32.totalorder %s148, %s149
      %p163 = scmp.eq.s32.totalorder %s26, 1
      %p164 = por %p162, %p163
      %p166 = scmp.ne.s32.totalorder %s149, %s165
      %p167 = scmp.eq.s32.totalorder %s26, 0
      %p168 = por %p166, %p167
      %p169 = scmp.le.s32.totalorder 1, %s20
      %p170 = scmp.lt.s32.totalorder %s20, 3
      %p171 = pnand %p169, %p170
      %p172 = pneg %p171
      // Predicated region
      $region9: #{tpu_custom_call.1} parent=5 // pred_check
        _
      $region10: #{tpu_custom_call.1} parent=5 // pred_check_branch
        %174 = sbr.rel (%p171) target = $region12
      $region11: #{tpu_custom_call.1} parent=5 // pred_region
        %s175 = ssub.s32 %s20, 1
        // Predicated region
        $region13: #{tpu_custom_call.1} parent=11 // pred_check
          %p176 = pneg %p93
        $region14: #{tpu_custom_call.1} parent=11 // pred_check_branch
          %178 = sbr.rel (%p176) target = $region16
        $region15: #{tpu_custom_call.1} parent=11 // pred_region
          _
        $region16: #{tpu_custom_call.1} parent=11 // pred_fallthru
          _
        // Predicated region
        $region17: #{tpu_custom_call.1} parent=11 // pred_check
          %p179 = pneg %p114
        $region18: #{tpu_custom_call.1} parent=11 // pred_check_branch
          %181 = sbr.rel (%p179) target = $region20
        $region19: #{tpu_custom_call.1} parent=11 // pred_region
          %s183 = ssub.s32 4096, 4096
          %184 = vsyncadd [#allocation6], %s183
          %s185 = sshll.u32 [#allocation7], 4
          %s186 = int_to_ptr.vmem [resolvable:$true] %s185
          %191 = dma.hbm_to_vmem [thread:$0]  %s3, 4096, %s186, [#allocation6], 256, 256, 16
        $region20: #{tpu_custom_call.1} parent=11 // pred_fallthru
          _
        // Predicated region
        $region21: #{tpu_custom_call.1} parent=11 // pred_check
          %p192 = pneg %p135
        $region22: #{tpu_custom_call.1} parent=11 // pred_check_branch
          %194 = sbr.rel (%p192) target = $region24
        $region23: #{tpu_custom_call.1} parent=11 // pred_region
          _
        $region24: #{tpu_custom_call.1} parent=11 // pred_fallthru
          _
      $region12: #{tpu_custom_call.1} parent=5 // pred_fallthru
        _
      %p195 = scmp.lt.s32.totalorder %s20, 2
      // Predicated region
      $region25: #{tpu_custom_call.1} parent=5 // pred_check
        %p196 = pneg %p195
      $region26: #{tpu_custom_call.1} parent=5 // pred_check_branch
        %198 = sbr.rel (%p196) target = $region28
      $region27: #{tpu_custom_call.1} parent=5 // pred_region
        // Predicated region
        $region29: #{tpu_custom_call.1} parent=27 // pred_check
          %p199 = pneg %p40
        $region30: #{tpu_custom_call.1} parent=27 // pred_check_branch
          %201 = sbr.rel (%p199) target = $region32
        $region31: #{tpu_custom_call.1} parent=27 // pred_region
          %s202 = sand.u32 %s30, 1
          %s203 = scalar_lea.sflag [#allocation3], %s202
          %s204 = sand.u32 %s30, 1
          %s205 = smul.addr %s204, 8
          %s206 = scalar_lea.vmem [#allocation2], %s205
          %s208 = ssub.s32 128, 128
          %209 = vsyncadd %s203, %s208
          %s210 = smul.addr %s20, 128
          %s211 = scalar_lea.hbm %s0, %s210
          %s213 = sshll.u32 %s206, 4
          %s214 = int_to_ptr.vmem [resolvable:$true] %s213
          %216 = dma.hbm_to_vmem [thread:$0]  %s211, 128, %s214, %s203
        $region32: #{tpu_custom_call.1} parent=27 // pred_fallthru
          _
        // Predicated region
        $region33: #{tpu_custom_call.1} parent=27 // pred_check
          %p217 = pneg %p66
        $region34: #{tpu_custom_call.1} parent=27 // pred_check_branch
          %219 = sbr.rel (%p217) target = $region36
        $region35: #{tpu_custom_call.1} parent=27 // pred_region
          %s220 = sand.u32 %s20, 1
          %s221 = scalar_lea.sflag [#allocation6], %s220
          %s222 = sand.u32 %s56, 1
          %s223 = smul.addr %s222, 8
          %s224 = scalar_lea.vmem [#allocation5], %s223
          %s226 = ssub.s32 128, 128
          %227 = vsyncadd %s221, %s226
          %s228 = smul.addr %s20, 128
          %s229 = scalar_lea.hbm %s1, %s228
          %s231 = sshll.u32 %s224, 4
          %s232 = int_to_ptr.vmem [resolvable:$true] %s231
          %234 = dma.hbm_to_vmem [thread:$0]  %s229, 128, %s232, %s221
        $region36: #{tpu_custom_call.1} parent=27 // pred_fallthru
          _
      $region28: #{tpu_custom_call.1} parent=5 // pred_fallthru
        _
      %p235 = scmp.le.s32.totalorder 1, %s20
      %p236 = scmp.lt.s32.totalorder %s20, 3
      %p237 = pnand %p235, %p236
      %p238 = pneg %p237
      // Predicated region
      $region37: #{tpu_custom_call.1} parent=5 // pred_check
        _
      $region38: #{tpu_custom_call.1} parent=5 // pred_check_branch
        %240 = sbr.rel (%p237) target = $region40
      $region39: #{tpu_custom_call.1} parent=5 // pred_region
        %s241 = ssub.s32 %s20, 1
        %s242 = sand.u32 %s33, 1
        %s243 = scalar_lea.sflag [#allocation3], %s242
        %s244 = sand.u32 %s33, 1
        %s245 = smul.addr %s244, 8
        %s246 = scalar_lea.vmem [#allocation2], %s245
        // Predicated region
        $region41: #{tpu_custom_call.1} parent=39 // pred_check
          %p247 = pneg %p46
        $region42: #{tpu_custom_call.1} parent=39 // pred_check_branch
          %249 = sbr.rel (%p247) target = $region44
        $region43: #{tpu_custom_call.1} parent=39 // pred_region
          %250 = dma.done %s243, 128
        $region44: #{tpu_custom_call.1} parent=39 // pred_fallthru
          _
        %s251 = sand.u32 %s25, 1
        %s252 = scalar_lea.sflag [#allocation6], %s251
        %s253 = sand.u32 %s59, 1
        %s254 = smul.addr %s253, 8
        %s255 = scalar_lea.vmem [#allocation5], %s254
        // Predicated region
        $region45: #{tpu_custom_call.1} parent=39 // pred_check
          %p256 = pneg %p72
        $region46: #{tpu_custom_call.1} parent=39 // pred_check_branch
          %258 = sbr.rel (%p256) target = $region48
        $region47: #{tpu_custom_call.1} parent=39 // pred_region
          %259 = dma.done %s252, 128
        $region48: #{tpu_custom_call.1} parent=39 // pred_fallthru
          _
        // Predicated region
        $region49: #{tpu_custom_call.1} parent=39 // pred_check
          %p260 = pneg %p114
        $region50: #{tpu_custom_call.1} parent=39 // pred_check_branch
          %262 = sbr.rel (%p260) target = $region52
        $region51: #{tpu_custom_call.1} parent=39 // pred_region
          %263 = dma.done [#allocation6], 4096
        $region52: #{tpu_custom_call.1} parent=39 // pred_fallthru
          _
        %s264 = sand.u32 %s33, 1
        %s265 = scalar_lea.sflag [#allocation3], %s264
        %s266 = sand.u32 %s33, 1
        %s267 = smul.addr %s266, 8
        %s268 = scalar_lea.vmem [#allocation2], %s267
        %p269 = pneg %p46
        %p270 = pneg %p43
        %s271 = sand.u32 %s25, 1
        %s272 = scalar_lea.sflag [#allocation6], %s271
        %s273 = sand.u32 %s59, 1
        %s274 = smul.addr %s273, 8
        %s275 = scalar_lea.vmem [#allocation5], %s274
        %p276 = pneg %p72
        %p277 = pneg %p69
        %p278 = pneg %p93
        %p279 = pneg %p90
        %p280 = pneg %p114
        %p281 = pneg %p111
        %p282 = pneg %p135
        %p283 = pneg %p132
        %p284 = pneg %p161
        %p285 = pneg %p158
        %s286 = sand.u32 %s148, 1
        %s287 = scalar_lea.sflag [#allocation4], %s286
        %s288 = sand.u32 %s148, 1
        %s289 = smul.addr %s288, 8
        %s290 = scalar_lea.vmem [#allocation8], %s289
        %v291 = vld [vmem:[%s246] sm:$0xff]
        %v292 = vld [vmem:[%s255] sm:$0xff]
        %293 = vadd.xlane.f32.xlu0 %v291
        %v294 = vpop.xlane.xlu0 %293
        %v295 = vmul.f32 %v294, 0.03125
        %v296 = vsub.f32 %v291, %v295
        %v297 = vmul.f32 %v296, %v296
        %298 = vadd.xlane.f32.xlu0 %v297
        %v299 = vpop.xlane.xlu0 %298
        %v300 = vmul.f32 %v295, %v295
        %v301 = vmul.f32 %v300, 96.0
        %v302 = vsub.f32 %v299, %v301
        %v303 = vmul.f32 %v302, 0.03125
        %v304 = vadd.f32 %v303, 1e-05
        %v305 = vrsqrt.pop %v304
        %v306 = vmul.f32 %v296, %v305
        %307 = vadd.xlane.f32.xlu0 %v292
        %v308 = vpop.xlane.xlu0 %307
        %v309 = vmul.f32 %v308, 0.015625
        %v310 = vsub.f32 %v292, %v309
        %v311 = vmul.f32 %v310, %v310
        %312 = vadd.xlane.f32.xlu0 %v311
        %v313 = vpop.xlane.xlu0 %312
        %v314 = vmul.f32 %v309, %v309
        %v315 = vmul.f32 %v314, 64.0
        %v316 = vsub.f32 %v313, %v315
        %v317 = vld [vmem:[%s2] sm:$0x1]
        %v318 = vmul.f32 %v316, 0.015625
        %v319 = vadd.f32 %v318, 1e-05
        %v320 = vrsqrt.pop %v319
        %v321 = vmul.f32 %v310, %v320
        %v323 = vlaneseq
        %v324 = vshrl.u32 %v323, 7
        %v325 = vsub.s32 0, %v324
        %v326 = vrot.slane %v317, %v325
        %v328 = vmul.f32 %v321, %v326
        %v329 = vld [vmem:[#allocation7] sm:$0xff]
        %v330 = vld [vmem:[#allocation7 + $0x8] sm:$0xff]
        %v331 = vld [vmem:[#allocation7 + $0x10] sm:$0xff]
        %v332 = vld [vmem:[#allocation7 + $0x18] sm:$0xff]
        %v333 = vld [vmem:[#allocation7 + $0x20] sm:$0xff]
        %v334 = vld [vmem:[#allocation7 + $0x28] sm:$0xff]
        %v335 = vld [vmem:[#allocation7 + $0x30] sm:$0xff]
        %v336 = vld [vmem:[#allocation7 + $0x38] sm:$0xff]
        %v337 = vld [vmem:[#allocation7 + $0x40] sm:$0xff]
        %v338 = vld [vmem:[#allocation7 + $0x48] sm:$0xff]
        %v339 = vld [vmem:[#allocation7 + $0x50] sm:$0xff]
        %v340 = vld [vmem:[#allocation7 + $0x58] sm:$0xff]
        %v341 = vld [vmem:[#allocation7 + $0x60] sm:$0xff]
        %v342 = vld [vmem:[#allocation7 + $0x68] sm:$0xff]
        %v343 = vld [vmem:[#allocation7 + $0x70] sm:$0xff]
        %v344 = vld [vmem:[#allocation7 + $0x78] sm:$0xff]
        %v345 = vld [vmem:[#allocation7 + $0x80] sm:$0xff]
        %v346 = vld [vmem:[#allocation7 + $0x88] sm:$0xff]
        %v347 = vld [vmem:[#allocation7 + $0x90] sm:$0xff]
        %v348 = vld [vmem:[#allocation7 + $0x98] sm:$0xff]
        %v349 = vld [vmem:[#allocation7 + $0xa0] sm:$0xff]
        %v350 = vld [vmem:[#allocation7 + $0xa8] sm:$0xff]
        %v351 = vld [vmem:[#allocation7 + $0xb0] sm:$0xff]
        %v352 = vld [vmem:[#allocation7 + $0xb8] sm:$0xff]
        %v353 = vld [vmem:[#allocation7 + $0xc0] sm:$0xff]
        %v354 = vld [vmem:[#allocation7 + $0xc8] sm:$0xff]
        %v355 = vld [vmem:[#allocation7 + $0xd0] sm:$0xff]
        %v356 = vld [vmem:[#allocation7 + $0xd8] sm:$0xff]
        %v357 = vld [vmem:[#allocation7 + $0xe0] sm:$0xff]
        %v358 = vld [vmem:[#allocation7 + $0xe8] sm:$0xff]
        %v359 = vld [vmem:[#allocation7 + $0xf0] sm:$0xff]
        %v360 = vld [vmem:[#allocation7 + $0xf8] sm:$0xff]
        %361 = vmatprep.subr.mxu0 %v330
        %362 = vmatpush1.msra.mxu0 %v329
        %363 = vmatprep.subr.mxu0 %v332
        %364 = vmatpush1.msra.mxu0 %v331
        %365 = vmatprep.subr.mxu0 %v334
        %366 = vmatpush1.msra.mxu0 %v333
        %367 = vmatprep.subr.mxu0 %v336
        %368 = vmatpush1.msra.mxu0 %v335
        %369 = vmatprep.subr.mxu0 %v338
        %370 = vmatpush1.msra.mxu0 %v337
        %371 = vmatprep.subr.mxu0 %v340
        %372 = vmatpush1.msra.mxu0 %v339
        %373 = vmatprep.subr.mxu0 %v342
        %374 = vmatpush1.msra.mxu0 %v341
        %375 = vmatprep.subr.mxu0 %v344
        %376 = vmatpush1.msra.mxu0 %v343
        %377 = vmatprep.subr.mxu0 %v346
        %378 = vmatpush1.msra.mxu0 %v345
        %379 = vmatprep.subr.mxu0 %v348
        %380 = vmatpush1.msra.mxu0 %v347
        %381 = vmatprep.subr.mxu0 %v350
        %382 = vmatpush1.msra.mxu0 %v349
        %383 = vmatprep.subr.mxu0 %v352
        %384 = vmatpush1.msra.mxu0 %v351
        %385 = vmatprep.subr.mxu0 %v354
        %386 = vmatpush1.msra.mxu0 %v353
        %387 = vmatprep.subr.mxu0 %v356
        %388 = vmatpush1.msra.mxu0 %v355
        %389 = vmatprep.subr.mxu0 %v358
        %390 = vmatpush1.msra.mxu0 %v357
        %391 = vmatprep.subr.mxu0 %v360
        %392 = vmatpush1.msra.mxu0 %v359
        %393 = vmatprep.subr.mxu0 0.0
        %394 = vmatpush1.msra.mxu0 0.0
        %395 = vmatprep.subr.mxu0 0.0
        %396 = vmatpush1.msra.mxu0 0.0
        %397 = vmatprep.subr.mxu0 0.0
        %398 = vmatpush1.msra.mxu0 0.0
        %399 = vmatprep.subr.mxu0 0.0
        %400 = vmatpush1.msra.mxu0 0.0
        %401 = vmatprep.subr.mxu0 0.0
        %402 = vmatpush1.msra.mxu0 0.0
        %403 = vmatprep.subr.mxu0 0.0
        %404 = vmatpush1.msra.mxu0 0.0
        %405 = vmatprep.subr.mxu0 0.0
        %406 = vmatpush1.msra.mxu0 0.0
        %407 = vmatprep.subr.mxu0 0.0
        %408 = vmatpush1.msra.mxu0 0.0
        %409 = vmatprep.subr.mxu0 0.0
        %410 = vmatpush1.msra.mxu0 0.0
        %411 = vmatprep.subr.mxu0 0.0
        %412 = vmatpush1.msra.mxu0 0.0
        %413 = vmatprep.subr.mxu0 0.0
        %414 = vmatpush1.msra.mxu0 0.0
        %415 = vmatprep.subr.mxu0 0.0
        %416 = vmatpush1.msra.mxu0 0.0
        %417 = vmatprep.subr.mxu0 0.0
        %418 = vmatpush1.msra.mxu0 0.0
        %419 = vmatprep.subr.mxu0 0.0
        %420 = vmatpush1.msra.mxu0 0.0
        %421 = vmatprep.subr.mxu0 0.0
        %422 = vmatpush1.msra.mxu0 0.0
        %423 = vmatprep.subr.mxu0 0.0
        %424 = vmatpush1.msra.mxu0 0.0
        %425 = vmatprep.mubr.f32.mxu0 0.0
        %426 = vmatmul.mubr.f32.gmra.mrb[0].mxu0 %v328
        %v427 = vpop.f32.mrb[0].mxu0
        %v428 = vadd.f32 0.0, %v427
        %v429 = vpop.f32.mrb[0].mxu0
        %v430 = vadd.f32 0.0, %v429
        %431 = vdwg.mxu0
        %v432 = vld [vmem:[%s4] sm:$0x1]
        %v434 = vlaneseq
        %v435 = vshrl.u32 %v434, 7
        %v436 = vsub.s32 0, %v435
        %v437 = vrot.slane %v432, %v436
        %v439 = vadd.f32 %v428, %v437
        %v440 = vxor.u32 %v439, 2147483648
        %v441 = vmul.f32 %v440, 1.442695
        %v442 = vpow.pop %v441
        %v443 = vadd.f32 %v442, 1.0
        %v444 = vrcp.pop %v443
        %v445 = vmul.f32 1.0, %v444
        %v446 = vmul.f32 %v445, %v306
        %v447 = vadd.f32 %v446, %v430
        %448 = vst [vmem:[%s290] sm:$0xff] %v447
        %s449 = sand.u32 %s148, 1
        %s450 = scalar_lea.sflag [#allocation4], %s449
        %s451 = sand.u32 %s148, 1
        %s452 = smul.addr %s451, 8
        %s453 = scalar_lea.vmem [#allocation8], %s452
        // Predicated region
        $region53: #{tpu_custom_call.1} parent=39 // pred_check
          %p454 = pneg %p158
        $region54: #{tpu_custom_call.1} parent=39 // pred_check_branch
          %456 = sbr.rel (%p454) target = $region56
        $region55: #{tpu_custom_call.1} parent=39 // pred_region
          %s458 = ssub.s32 128, 128
          %459 = vsyncadd %s450, %s458
          %s460 = smul.addr %s25, 128
          %s461 = scalar_lea.hbm %s5, %s460
          %s463 = sshll.u32 %s453, 4
          %s464 = int_to_ptr.vmem [resolvable:$true] %s463
          %466 = dma.vmem_to_hbm [thread:$0]  %s464, 128, %s461, %s450
        $region56: #{tpu_custom_call.1} parent=39 // pred_fallthru
          _
      $region40: #{tpu_custom_call.1} parent=5 // pred_fallthru
        _
      %p467 = scmp.le.s32.totalorder 2, %s20
      // Predicated region
      $region57: #{tpu_custom_call.1} parent=5 // pred_check
        %p468 = pneg %p467
      $region58: #{tpu_custom_call.1} parent=5 // pred_check_branch
        %470 = sbr.rel (%p468) target = $region60
      $region59: #{tpu_custom_call.1} parent=5 // pred_region
        %s471 = ssub.s32 %s20, 2
        // Predicated region
        $region61: #{tpu_custom_call.1} parent=59 // pred_check
          %p472 = pneg %p164
        $region62: #{tpu_custom_call.1} parent=59 // pred_check_branch
          %474 = sbr.rel (%p472) target = $region64
        $region63: #{tpu_custom_call.1} parent=59 // pred_region
          %s475 = sand.u32 %s149, 1
          %s476 = scalar_lea.sflag [#allocation4], %s475
          %s477 = sand.u32 %s149, 1
          %s478 = smul.addr %s477, 8
          %s479 = scalar_lea.vmem [#allocation8], %s478
          %480 = dma.done %s476, 128
        $region64: #{tpu_custom_call.1} parent=59 // pred_fallthru
          _
      $region60: #{tpu_custom_call.1} parent=5 // pred_fallthru
        _
    $region6: #{tpu_custom_call.1} parent=1 // loop_footer
      %s24 = sadd.s32 1, %s20
    $region7: #{tpu_custom_call.1} parent=1 // loop_footer_branch
      %19 = sbr.rel target = $region3
    $region8: #{tpu_custom_call.1} parent=1 // loop_exit
      _
    %481 = vsyncpa [#allocation3], 1
    %s482 = scalar_lea.sflag [#allocation3], 1
    %483 = vsyncpa %s482, 1
    %484 = vsyncpa [#allocation6], 1
    %s485 = scalar_lea.sflag [#allocation6], 1
    %486 = vsyncpa %s485, 1
    %487 = vsyncpa [#allocation4], 1
    %s488 = scalar_lea.sflag [#allocation4], 1
    %489 = vsyncpa %s488, 1

</llo_original>
